<compile_context>
chip_gen: v7x
topology: tpu7x:2x2x1
jax: 0.10.0
libtpu: 0.0.40
codegen_flags: <defaults>
</compile_context>

<pallas_src>
import math
import functools

import jax
import jax.numpy as jnp
from jax.experimental import pallas as pl
from jax.experimental.pallas import tpu as pltpu


def build_pe_table(d_model: int, max_len: int, dtype=jnp.float32) -> jnp.ndarray:
    """Sinusoidal table identical to the torch buffer `pe[:, 0, :]`."""
    position = jnp.arange(max_len, dtype=jnp.float32)[:, None]            # (max_len, 1)
    div_term = jnp.exp(
        jnp.arange(0, d_model, 2, dtype=jnp.float32) * (-math.log(10000.0) / d_model)
    )                                                                      # (d_model//2,)
    sin_part = jnp.sin(position * div_term)                                # (max_len, d/2)
    cos_part = jnp.cos(position * div_term)                                # (max_len, d/2)
    # interleave -> columns 0::2 = sin, 1::2 = cos
    pe = jnp.stack([sin_part, cos_part], axis=-1).reshape(max_len, d_model)
    return pe.astype(dtype)                                                # (max_len, d_model)


def _mix32(x):
    """lowbias32 finalizer: a few int32 VPU ops, free under the HBM roofline."""
    x = x ^ (x >> jnp.uint32(16))
    x = x * jnp.uint32(0x7FEB352D)
    x = x ^ (x >> jnp.uint32(15))
    x = x * jnp.uint32(0x846CA68B)
    x = x ^ (x >> jnp.uint32(16))
    return x


def _pe_dropout_kernel(seed_ref, x_ref, pe_ref, o_ref, *,
                       batch, d_model, tile_s, dropout_p, training):
    # x_ref / o_ref: (tile_s * batch, d_model)  — lane/sublane-dense view of [S,B,D]
    # pe_ref:        (tile_s, d_model)
    x = x_ref[...]
    pe = pe_ref[...]

    # Row r of the flattened tile is seq position r // batch: repeat each pe row
    # `batch` times along the sublane axis (small, pe-sized op).
    pe_rows = jnp.broadcast_to(pe[:, None, :], (tile_s, batch, d_model))
    pe_rows = pe_rows.reshape(tile_s * batch, d_model)
    y = x + pe_rows

    if training and dropout_p > 0.0:
        if dropout_p >= 1.0:
            # torch.nn.Dropout(p=1.0) zeroes everything.
            y = jnp.zeros_like(y)
        else:
            tile_rows = tile_s * batch
            # Global element index -> tiling-independent, reproducible mask.
            row0 = (pl.program_id(0) * tile_rows).astype(jnp.uint32)
            row = row0 + jax.lax.broadcasted_iota(jnp.int32, y.shape, 0).astype(jnp.uint32)
            col = jax.lax.broadcasted_iota(jnp.int32, y.shape, 1).astype(jnp.uint32)
            idx = row * jnp.uint32(d_model) + col
            seed = seed_ref[0].astype(jnp.uint32)
            bits = _mix32(idx ^ _mix32(seed))
            # keep iff uniform32 >= p * 2^32  (clamped so p ~ 1 cannot wrap to 0)
            threshold = jnp.uint32(min(int(round(dropout_p * 2.0 ** 32)), 2 ** 32 - 1))
            keep = bits >= threshold
            scale = jnp.asarray(1.0 / (1.0 - dropout_p), dtype=y.dtype)
            y = jnp.where(keep, y * scale, jnp.zeros_like(y))

    o_ref[...] = y


def _pick_tile_s(seq_len, batch, d_model, itemsize, target_bytes=2 * 1024 * 1024):
    """Largest sublane-aligned (multiple of 8) divisor of seq_len whose x block
    stays within ~target_bytes, preferring >= 2 grid steps (pipelining + megacore)."""
    cands = [t for t in range(8, seq_len + 1, 8) if seq_len % t == 0]
    if not cands:
        return seq_len                      # tiny / odd seq_len: single full block
    within = [t for t in cands if t * batch * d_model * itemsize <= target_bytes]
    pool = within if within else [min(cands)]
    multi = [t for t in pool if seq_len // t >= 2]
    pool = multi if multi else pool
    return max(pool)


def positional_encoding(x, pe_table, seed, *, dropout_p=0.1, training=True,
                        tile_s=None, donate_x=False):
    """x: [S, B, D].  pe_table: [max_len, D].  Returns dropout(x + pe[:S]) as [S, B, D]."""
    S, B, D = x.shape
    itemsize = jnp.dtype(x.dtype).itemsize
    if tile_s is None:
        tile_s = _pick_tile_s(S, B, D, itemsize)
    assert S % tile_s == 0, (S, tile_s)

    pe_slice = pe_table[:S].astype(x.dtype)           # cast once; halves pe DMA for bf16
    seed_arr = jnp.asarray([seed], dtype=jnp.int32)

    # Free metadata reshape for row-major [S, B, D] -> lane/sublane-dense 2-D view.
    x2 = x.reshape(S * B, D)
    tile_rows = tile_s * B

    kernel = functools.partial(
        _pe_dropout_kernel, batch=B, d_model=D, tile_s=tile_s,
        dropout_p=float(dropout_p), training=bool(training))

    grid_spec = pltpu.PrefetchScalarGridSpec(
        num_scalar_prefetch=1,
        grid=(S // tile_s,),
        in_specs=[
            pl.BlockSpec((tile_rows, D), lambda i, seed: (i, 0)),   # x
            pl.BlockSpec((tile_s, D), lambda i, seed: (i, 0)),      # pe
        ],
        out_specs=pl.BlockSpec((tile_rows, D), lambda i, seed: (i, 0)),
    )

    out2 = pl.pallas_call(
        kernel,
        out_shape=jax.ShapeDtypeStruct((S * B, D), x.dtype),
        grid_spec=grid_spec,
        compiler_params=pltpu.CompilerParams(
            dimension_semantics=("parallel",),          # shards grid across v7x's 2 TCs
            vmem_limit_bytes=32 * 1024 * 1024,          # safe on v5e/v6e/v7x (<=64 MiB)
        ),
        # Optional: reuse x's HBM buffer for the output when the caller donates x.
        input_output_aliases=({1: 0} if donate_x else {}),
    )(seed_arr, x2, pe_slice)

    return out2.reshape(S, B, D)


if __name__ == "__main__":
    S, B, D = 16, 4, 32          # seq_len, batch, d_model
    MAX_LEN = 64                 # small stand-in for the module's 16000 default

    key = jax.random.PRNGKey(0)
    x = jax.random.normal(key, (S, B, D), dtype=jnp.float32)
    pe_table = build_pe_table(D, MAX_LEN)

    ref = x + pe_table[:S][:, None, :]

    # Eval mode (dropout is identity): must match the plain-JAX reference.
    out_eval = positional_encoding(x, pe_table, seed=0, dropout_p=0.1, training=False)
    out_eval = jax.block_until_ready(out_eval)
    assert jnp.allclose(out_eval, ref, atol=1e-6), "eval-mode mismatch"

    # Training mode: surviving elements equal ref / (1 - p); dropped elements are 0.
    p = 0.1
    out_train = positional_encoding(x, pe_table, seed=123, dropout_p=p, training=True)
    out_train = jax.block_until_ready(out_train)
    assert out_train.shape == (S, B, D)
    kept = out_train != 0.0
    assert jnp.allclose(jnp.where(kept, out_train, 0.0),
                        jnp.where(kept, ref / (1.0 - p), 0.0),
                        atol=1e-5), "train-mode value mismatch"
    drop_frac = float(1.0 - kept.mean())
    assert 0.0 <= drop_frac <= 0.35, f"implausible drop fraction {drop_frac}"

    print("KERNEL_OK")
</pallas_src>

<mosaic_0001>
module attributes {stable_mosaic.version = 11 : i64} {
  func.func @_pe_dropout_kernel(%arg0: i32, %arg1: memref<1xi32, #tpu.memory_space<smem>>, %arg2: memref<32x32xf32, #tpu.memory_space<vmem>>, %arg3: memref<8x32xf32, #tpu.memory_space<vmem>>, %arg4: memref<32x32xf32, #tpu.memory_space<vmem>>) attributes {dimension_semantics = [#tpu.dimension_semantics<parallel>], iteration_bounds = array<i64: 2>, scalar_prefetch = 1 : i64, scratch_operands = 0 : i64, tpu.core_type = #tpu.core_type<tc>, window_params = [{transform_indices = @transform_0, window_bounds = array<i64: 32, 32>}, {transform_indices = @transform_1, window_bounds = array<i64: 8, 32>}, {transform_indices = @transform_2, window_bounds = array<i64: 32, 32>}]} {
    %c0 = arith.constant 0 : index
    %c0_0 = arith.constant 0 : index
    %0 = vector.load %arg2[%c0, %c0_0] : memref<32x32xf32, #tpu.memory_space<vmem>>, vector<32x32xf32>
    %c0_1 = arith.constant 0 : index
    %c0_2 = arith.constant 0 : index
    %1 = vector.load %arg3[%c0_1, %c0_2] : memref<8x32xf32, #tpu.memory_space<vmem>>, vector<8x32xf32>
    %2 = vector.shape_cast %1 : vector<8x32xf32> to vector<8x1x32xf32>
    %3 = vector.shape_cast %2 : vector<8x1x32xf32> to vector<8x1x32xf32>
    %4 = vector.broadcast %3 : vector<8x1x32xf32> to vector<8x4x32xf32>
    %5 = vector.shape_cast %4 : vector<8x4x32xf32> to vector<32x32xf32>
    %6 = arith.addf %0, %5 : vector<32x32xf32>
    %c0_3 = arith.constant 0 : index
    %c0_4 = arith.constant 0 : index
    %7 = vector.load %arg4[%c0_3, %c0_4] : memref<32x32xf32, #tpu.memory_space<vmem>>, vector<32x32xf32>
    tpu.vector_store %arg4[%c0_3, %c0_4], %6 {strides = array<i32>} : memref<32x32xf32, #tpu.memory_space<vmem>>, vector<32x32xf32>,
    return
  }
  func.func @transform_0(%arg0: i32, %arg1: memref<1xi32, #tpu.memory_space<smem>>) -> (i32, i32) {
    %c0_i32 = arith.constant 0 : i32
    %c0_i32_0 = arith.constant 0 : i32
    return %arg0, %c0_i32 : i32, i32
  }
  func.func @transform_1(%arg0: i32, %arg1: memref<1xi32, #tpu.memory_space<smem>>) -> (i32, i32) {
    %c0_i32 = arith.constant 0 : i32
    %c0_i32_0 = arith.constant 0 : i32
    return %arg0, %c0_i32 : i32, i32
  }
  func.func @transform_2(%arg0: i32, %arg1: memref<1xi32, #tpu.memory_space<smem>>) -> (i32, i32) {
    %c0_i32 = arith.constant 0 : i32
    %c0_i32_0 = arith.constant 0 : i32
    return %arg0, %c0_i32 : i32, i32
  }
}

</mosaic_0001>

<llo_original>
// kernel: tpu_custom_call.1
$region0: #{tpu_custom_call.1}
  #allocation0 [shape = 'u32[]', space=smem, size = 0x4, offset = 0x4, fixed_abs, tag = 'smem constant byte address 0x4 - core index']
  #allocation1 [shape = 'u32[144,128]{1,0:T(1,128)}', space=vmem, size = 0x12000, scoped, tag = 'internal scratch']
  #allocation2 [shape = 's32[1]{0}', space=sflag, size = 0x4, scoped, tag = 'scoped memory for tpu_custom_call.1']
  #allocation3 [shape = 's32[1]{0:T(128)S(6)}', space=smem, size = 0x200, scoped, tag = 'prefetched SMEM operand 0']
  %s0 = inlined_call_operand.<no memory space> [shape: s32[1], index: 0, kind: input, shape index: {}]
  %s1 = inlined_call_operand.vmem [shape: f32[64,32], index: 1, kind: input, shape index: {}]
  %s2 = inlined_call_operand.vmem [shape: f32[16,32], index: 2, kind: input, shape index: {}]
  %s3 = inlined_call_operand.vmem [shape: f32[64,32], index: 3, kind: output, shape index: {}]
  %s4 = sld [smem:[#allocation0]]
  $region41: #{tpu_custom_call.1} parent=0
    _
  %s6 = ssub.s32 1, %s4
  %s7 = scalar_select 0, %s6, %s4
  %8 = sst [smem:[#allocation3]] %s0
  loop: start=0, step=1, limit=4
  $region2: #{tpu_custom_call.1} parent=0 // loop_pre_header
    _
  $region3: #{tpu_custom_call.1} parent=0 // loop_header
    %s10 = sphi 0, %s14
    %p11 = scmp.ge.s32.totalorder %s10, 4
    %s20 = sphi 0, %s22
    %s23 = sphi 0, %s20
    %s24 = sphi 0, %s23
    %s40 = sphi 0, %s24
    %s46 = sphi 0, %s48
    %s49 = sphi 0, %s46
    %s50 = sphi 0, %s49
    %s66 = sphi 0, %s50
    %s72 = sphi 0, %s74
    %s75 = sphi 0, %s72
    %s76 = sphi 0, %s75
    %s92 = sphi 0, %s76
  $region4: #{tpu_custom_call.1} parent=0 // loop_header_branch
    %13 = sbr.rel (%p11) target = $region8
  $region5: #{tpu_custom_call.1} parent=0 // loop_body
    %s15 = ssub.s32 %s10, 1
    %s16 = ssub.s32 %s10, 2
    %s17 = sadd.s32 %s10, 1
    %s18 = ssub.s32 %s10, %s17
    %p19 = scmp.eq.s32.totalorder %s18, 0
    %s21 = sadd.s32 %s20, 1
    %s22 = scalar_select %p19, %s20, %s21
    %p25 = pneg %p19
    %p26 = scmp.eq.s32.totalorder %s10, 1
    %p27 = por %p25, %p26
    %p28 = scmp.ne.s32.totalorder %s20, %s23
    %p29 = scmp.eq.s32.totalorder %s10, 0
    %p30 = por %p28, %p29
    %p31 = scmp.ne.s32.totalorder %s20, %s23
    %p32 = scmp.eq.s32.totalorder %s15, 1
    %p33 = por %p31, %p32
    %p34 = scmp.ne.s32.totalorder %s23, %s24
    %p35 = scmp.eq.s32.totalorder %s15, 0
    %p36 = por %p34, %p35
    %p37 = scmp.ne.s32.totalorder %s23, %s24
    %p38 = scmp.eq.s32.totalorder %s16, 1
    %p39 = por %p37, %p38
    %p41 = scmp.ne.s32.totalorder %s24, %s40
    %p42 = scmp.eq.s32.totalorder %s16, 0
    %p43 = por %p41, %p42
    %s44 = ssub.s32 %s10, %s17
    %p45 = scmp.eq.s32.totalorder %s44, 0
    %s47 = sadd.s32 %s46, 1
    %s48 = scalar_select %p45, %s46, %s47
    %p51 = pneg %p45
    %p52 = scmp.eq.s32.totalorder %s10, 1
    %p53 = por %p51, %p52
    %p54 = scmp.ne.s32.totalorder %s46, %s49
    %p55 = scmp.eq.s32.totalorder %s10, 0
    %p56 = por %p54, %p55
    %p57 = scmp.ne.s32.totalorder %s46, %s49
    %p58 = scmp.eq.s32.totalorder %s15, 1
    %p59 = por %p57, %p58
    %p60 = scmp.ne.s32.totalorder %s49, %s50
    %p61 = scmp.eq.s32.totalorder %s15, 0
    %p62 = por %p60, %p61
    %p63 = scmp.ne.s32.totalorder %s49, %s50
    %p64 = scmp.eq.s32.totalorder %s16, 1
    %p65 = por %p63, %p64
    %p67 = scmp.ne.s32.totalorder %s50, %s66
    %p68 = scmp.eq.s32.totalorder %s16, 0
    %p69 = por %p67, %p68
    %s70 = ssub.s32 %s10, %s17
    %p71 = scmp.eq.s32.totalorder %s70, 0
    %s73 = sadd.s32 %s72, 1
    %s74 = scalar_select %p71, %s72, %s73
    %p77 = pneg %p71
    %p78 = scmp.eq.s32.totalorder %s10, 1
    %p79 = por %p77, %p78
    %p80 = scmp.ne.s32.totalorder %s72, %s75
    %p81 = scmp.eq.s32.totalorder %s10, 0
    %p82 = por %p80, %p81
    %p83 = scmp.ne.s32.totalorder %s72, %s75
    %p84 = scmp.eq.s32.totalorder %s15, 1
    %p85 = por %p83, %p84
    %p86 = scmp.ne.s32.totalorder %s75, %s76
    %p87 = scmp.eq.s32.totalorder %s15, 0
    %p88 = por %p86, %p87
    %p89 = scmp.ne.s32.totalorder %s75, %s76
    %p90 = scmp.eq.s32.totalorder %s16, 1
    %p91 = por %p89, %p90
    %p93 = scmp.ne.s32.totalorder %s76, %s92
    %p94 = scmp.eq.s32.totalorder %s16, 0
    %p95 = por %p93, %p94
    %p96 = scmp.le.s32.totalorder 1, %s10
    %p97 = scmp.lt.s32.totalorder %s10, 3
    %p98 = pnand %p96, %p97
    %p99 = pneg %p98
    // Predicated region
    $region9: #{tpu_custom_call.1} parent=5 // pred_check
      _
    $region10: #{tpu_custom_call.1} parent=5 // pred_check_branch
      %101 = sbr.rel (%p98) target = $region12
    $region11: #{tpu_custom_call.1} parent=5 // pred_region
      %s102 = ssub.s32 %s10, 1
    $region12: #{tpu_custom_call.1} parent=5 // pred_fallthru
      _
    %p103 = scmp.lt.s32.totalorder %s10, 2
    // Predicated region
    $region13: #{tpu_custom_call.1} parent=5 // pred_check
      %p104 = pneg %p103
    $region14: #{tpu_custom_call.1} parent=5 // pred_check_branch
      %106 = sbr.rel (%p104) target = $region16
    $region15: #{tpu_custom_call.1} parent=5 // pred_region
      // Predicated region
      $region17: #{tpu_custom_call.1} parent=15 // pred_check
        %p107 = pneg %p30
      $region18: #{tpu_custom_call.1} parent=15 // pred_check_branch
        %109 = sbr.rel (%p107) target = $region20
      $region19: #{tpu_custom_call.1} parent=15 // pred_region
        %s110 = smul.u32 4, %s10
        %p111 = scmp.lt.s32.totalorder %s110, 7
        %s112 = scalar_select %p111, %s110, 7
        %s113 = smul.addr %s112, 8
        %s114 = scalar_lea.vmem %s1, %s113
        %s115 = smul.u32 4, %s10
      $region20: #{tpu_custom_call.1} parent=15 // pred_fallthru
        _
      // Predicated region
      $region21: #{tpu_custom_call.1} parent=15 // pred_check
        %p116 = pneg %p56
      $region22: #{tpu_custom_call.1} parent=15 // pred_check_branch
        %118 = sbr.rel (%p116) target = $region24
      $region23: #{tpu_custom_call.1} parent=15 // pred_region
        %p119 = scmp.lt.s32.totalorder %s10, 1
        %s120 = scalar_select %p119, %s10, 1
        %s121 = smul.addr %s120, 8
        %s122 = scalar_lea.vmem %s2, %s121
      $region24: #{tpu_custom_call.1} parent=15 // pred_fallthru
        _
    $region16: #{tpu_custom_call.1} parent=5 // pred_fallthru
      _
    %p123 = scmp.le.s32.totalorder 1, %s10
    %p124 = scmp.lt.s32.totalorder %s10, 3
    %p125 = pnand %p123, %p124
    %p126 = pneg %p125
    // Predicated region
    $region25: #{tpu_custom_call.1} parent=5 // pred_check
      _
    $region26: #{tpu_custom_call.1} parent=5 // pred_check_branch
      %128 = sbr.rel (%p125) target = $region28
    $region27: #{tpu_custom_call.1} parent=5 // pred_region
      %s129 = ssub.s32 %s10, 1
      %s130 = smul.u32 4, %s15
      %p131 = scmp.lt.s32.totalorder %s130, 7
      %s132 = scalar_select %p131, %s130, 7
      %s133 = smul.addr %s132, 8
      %s134 = scalar_lea.vmem %s1, %s133
      %p135 = pneg %p36
      %p136 = pneg %p33
      %p137 = scmp.lt.s32.totalorder %s15, 1
      %s138 = scalar_select %p137, %s15, 1
      %s139 = smul.addr %s138, 8
      %s140 = scalar_lea.vmem %s2, %s139
      %p141 = pneg %p62
      %p142 = pneg %p59
      %p143 = pneg %p88
      %p144 = pneg %p85
      %s145 = smul.u32 4, %s15
      %p146 = scmp.lt.s32.totalorder %s145, 7
      %s147 = scalar_select %p146, %s145, 7
      %s148 = smul.addr %s147, 8
      %s149 = scalar_lea.vmem %s3, %s148
      %s150 = smul.u32 4, %s15
      %p151 = scmp.lt.s32.totalorder %s150, 7
      %s152 = scalar_select %p151, %s150, 7
      %s153 = smul.addr %s152, 8
      %s154 = scalar_lea.vmem %s1, %s153
      %s155 = smul.u32 4, %s15
      %p156 = scmp.lt.s32.totalorder %s15, 1
      %s157 = scalar_select %p156, %s15, 1
      %s158 = smul.addr %s157, 8
      %s159 = scalar_lea.vmem %s2, %s158
      %s160 = smul.u32 4, %s15
      %p161 = scmp.lt.s32.totalorder %s160, 7
      %s162 = scalar_select %p161, %s160, 7
      %s163 = smul.addr %s162, 8
      %s164 = scalar_lea.vmem %s3, %s163
      %s165 = smul.u32 4, %s15
      %v166 = vld [vmem:[%s154] sm:$0xff]
      %v167 = vld [vmem:[%s154 + $0x8] sm:$0xff]
      %v168 = vld [vmem:[%s154 + $0x10] sm:$0xff]
      %v169 = vld [vmem:[%s154 + $0x18] sm:$0xff]
      %v170 = vld [vmem:[%s159] sm:$0xff]
      %v172 = vcombine.high %v170, %v170
      %v174 = vunpack.c.l.s4 1966171168
      %v175 = vunpack.c.0.s8 %v174
      %v176 = vlaneseq
      %v177 = vshrl.u32 %v176, 7
      %v178 = vsub.s32 %v175, %v177
      %v179 = vrot.slane %v170, %v178
      %v181 = vunpack.c.l.s4 1966171168
      %v182 = vunpack.c.0.s8 %v181
      %v183 = vlaneseq
      %v184 = vshrl.u32 %v183, 7
      %v185 = vsub.s32 %v182, %v184
      %v186 = vrot.slane %v172, %v185
      %v187 = vcombine.high %v179, %v179
      %v188 = vcombine.high %v186, %v186
      %v190 = vunpack.c.l.s4 1966171168
      %v191 = vunpack.c.0.s8 %v190
      %v192 = vlaneseq
      %v193 = vshrl.u32 %v192, 7
      %v194 = vsub.s32 %v191, %v193
      %v195 = vrot.slane %v179, %v194
      %v197 = vunpack.c.l.s4 1966171168
      %v198 = vunpack.c.0.s8 %v197
      %v199 = vlaneseq
      %v200 = vshrl.u32 %v199, 7
      %v201 = vsub.s32 %v198, %v200
      %v202 = vrot.slane %v186, %v201
      %v204 = vunpack.c.l.s4 1966171168
      %v205 = vunpack.c.0.s8 %v204
      %v206 = vlaneseq
      %v207 = vshrl.u32 %v206, 7
      %v208 = vsub.s32 %v205, %v207
      %v209 = vrot.slane %v187, %v208
      %v211 = vunpack.c.l.s4 1966171168
      %v212 = vunpack.c.0.s8 %v211
      %v213 = vlaneseq
      %v214 = vshrl.u32 %v213, 7
      %v215 = vsub.s32 %v212, %v214
      %v216 = vrot.slane %v188, %v215
      %v217 = vcombine.high %v195, %v195
      %v218 = vcombine.high %v202, %v202
      %v219 = vcombine.high %v209, %v209
      %v220 = vcombine.high %v216, %v216
      %v221 = vlaneseq
      %v222 = vshrl.u32 %v221, 7
      %v223 = vsub.s32 0, %v222
      %v224 = vrot.slane %v195, %v223
      %v225 = vlaneseq
      %v226 = vshrl.u32 %v225, 7
      %v227 = vsub.s32 0, %v226
      %v228 = vrot.slane %v209, %v227
      %v229 = vlaneseq
      %v230 = vshrl.u32 %v229, 7
      %v231 = vsub.s32 0, %v230
      %v232 = vrot.slane %v217, %v231
      %v233 = vlaneseq
      %v234 = vshrl.u32 %v233, 7
      %v235 = vsub.s32 0, %v234
      %v236 = vrot.slane %v219, %v235
      %v237 = vlaneseq
      %v238 = vshrl.u32 %v237, 7
      %v239 = vsub.s32 0, %v238
      %v240 = vrot.slane %v202, %v239
      %v241 = vlaneseq
      %v242 = vshrl.u32 %v241, 7
      %v243 = vsub.s32 0, %v242
      %v244 = vrot.slane %v216, %v243
      %v245 = vlaneseq
      %v246 = vshrl.u32 %v245, 7
      %v247 = vsub.s32 0, %v246
      %v248 = vrot.slane %v218, %v247
      %v249 = vlaneseq
      %v250 = vshrl.u32 %v249, 7
      %v251 = vsub.s32 0, %v250
      %v252 = vrot.slane %v220, %v251
      %v253 = vcombine.low %v224, %v228
      %v254 = vcombine.low %v232, %v236
      %v255 = vcombine.low %v240, %v244
      %v256 = vcombine.low %v248, %v252
      %v261 = vadd.f32 %v166, %v253
      %v262 = vadd.f32 %v167, %v254
      %v263 = vadd.f32 %v168, %v255
      %v264 = vadd.f32 %v169, %v256
      %vm265 = vcmask 261120
      %266 = vst.msk [vmem:[%s164] sm:$0xff] %vm265, %v261
      %267 = vst.msk [vmem:[%s164 + $0x8] sm:$0xff] %vm265, %v262
      %268 = vst.msk [vmem:[%s164 + $0x10] sm:$0xff] %vm265, %v263
      %269 = vst.msk [vmem:[%s164 + $0x18] sm:$0xff] %vm265, %v264
      %s270 = smul.u32 4, %s15
      %p271 = scmp.lt.s32.totalorder %s270, 7
      %s272 = scalar_select %p271, %s270, 7
      %s273 = smul.addr %s272, 8
      %s274 = scalar_lea.vmem %s3, %s273
      // Predicated region
      $region29: #{tpu_custom_call.1} parent=27 // pred_check
        %p275 = pneg %p85
      $region30: #{tpu_custom_call.1} parent=27 // pred_check_branch
        %277 = sbr.rel (%p275) target = $region32
      $region31: #{tpu_custom_call.1} parent=27 // pred_region
        %s278 = smul.u32 4, %s15
      $region32: #{tpu_custom_call.1} parent=27 // pred_fallthru
        _
    $region28: #{tpu_custom_call.1} parent=5 // pred_fallthru
      _
    %p279 = scmp.le.s32.totalorder 2, %s10
    // Predicated region
    $region33: #{tpu_custom_call.1} parent=5 // pred_check
      %p280 = pneg %p279
    $region34: #{tpu_custom_call.1} parent=5 // pred_check_branch
      %282 = sbr.rel (%p280) target = $region36
    $region35: #{tpu_custom_call.1} parent=5 // pred_region
      %s283 = ssub.s32 %s10, 2
      // Predicated region
      $region37: #{tpu_custom_call.1} parent=35 // pred_check
        %p284 = pneg %p91
      $region38: #{tpu_custom_call.1} parent=35 // pred_check_branch
        %286 = sbr.rel (%p284) target = $region40
      $region39: #{tpu_custom_call.1} parent=35 // pred_region
        %s287 = smul.u32 4, %s16
        %p288 = scmp.lt.s32.totalorder %s287, 7
        %s289 = scalar_select %p288, %s287, 7
        %s290 = smul.addr %s289, 8
        %s291 = scalar_lea.vmem %s3, %s290
      $region40: #{tpu_custom_call.1} parent=35 // pred_fallthru
        _
    $region36: #{tpu_custom_call.1} parent=5 // pred_fallthru
      _
  $region6: #{tpu_custom_call.1} parent=0 // loop_footer
    %s14 = sadd.s32 1, %s10
  $region7: #{tpu_custom_call.1} parent=0 // loop_footer_branch
    %9 = sbr.rel target = $region3
  $region8: #{tpu_custom_call.1} parent=0 // loop_exit
    _

</llo_original>
